<compile_context>
chip_gen: v6e
topology: v6e:2x2x1
jax: 0.10.0
libtpu: 0.0.40
codegen_flags: <defaults>
</compile_context>

<pallas_src>
import jax
import jax.numpy as jnp
from jax import lax
from jax.experimental import pallas as pl
from jax.experimental.pallas import tpu as pltpu

# PyTorch nn.Linear stores W as (out_features, in_features) and computes
# y = x @ W.T + b.  Contract last dim of x against last dim of W so the MXU
# consumes W directly — no transpose pass anywhere.
_DN = (((1,), (1,)), ((), ()))


def _mlp_kernel(x_ref, w1_ref, b1_ref, w2_ref, b2_ref, w3_ref, b3_ref, o_ref):
    # fc1 + ReLU  (bf16 matmul, f32 accumulate + f32 epilogue)
    h1 = lax.dot_general(x_ref[...], w1_ref[...], _DN,
                         preferred_element_type=jnp.float32)
    h1 = jnp.maximum(h1 + b1_ref[...], 0.0)
    # fc2 + ReLU
    h2 = lax.dot_general(h1.astype(jnp.bfloat16), w2_ref[...], _DN,
                         preferred_element_type=jnp.float32)
    h2 = jnp.maximum(h2 + b2_ref[...], 0.0)
    # fc3 (no activation)
    h3 = lax.dot_general(h2.astype(jnp.bfloat16), w3_ref[...], _DN,
                         preferred_element_type=jnp.float32)
    o_ref[...] = (h3 + b3_ref[...]).astype(o_ref.dtype)


def simple_nn_forward(x_nchw, params, *, tm=1024):
    """Forward pass matching SimpleNN.forward. x_nchw: (B, 1, 28, 28) f32."""
    w1, b1, w2, b2, w3, b3 = params
    B = x_nchw.shape[0]

    # torch: x.view(-1, 28*28) (row-major flatten); stream activations as bf16.
    x = x_nchw.reshape(B, 28 * 28).astype(jnp.bfloat16)

    # Weights stay in PyTorch (out, in) layout — just a dtype cast, no transpose.
    w1b, w2b, w3b = (w.astype(jnp.bfloat16) for w in (w1, w2, w3))
    b1r, b2r, b3r = b1.reshape(1, -1), b2.reshape(1, -1), b3.reshape(1, -1)

    tm = min(tm, B)                      # small batches: one full-array tile
    grid = (pl.cdiv(B, tm),)

    def resident(arr):                   # weights/biases: constant block index
        return pl.BlockSpec(arr.shape, lambda i: (0, 0))

    flops = 2 * B * (784 * 128 + 128 * 64 + 64 * 10)
    bytes_accessed = (x.size * 2 + B * 10 * 4
                      + sum(w.size * 2 for w in (w1b, w2b, w3b))
                      + sum(b.size * 4 for b in (b1, b2, b3)))

    return pl.pallas_call(
        _mlp_kernel,
        out_shape=jax.ShapeDtypeStruct((B, 10), jnp.float32),
        grid=grid,
        in_specs=[
            pl.BlockSpec((tm, 28 * 28), lambda i: (i, 0)),   # x: streamed tiles
            resident(w1b), resident(b1r),
            resident(w2b), resident(b2r),
            resident(w3b), resident(b3r),
        ],
        out_specs=pl.BlockSpec((tm, 10), lambda i: (i, 0)),
        compiler_params=pltpu.CompilerParams(
            dimension_semantics=("parallel",)),
        cost_estimate=pl.CostEstimate(
            flops=flops, transcendentals=0, bytes_accessed=bytes_accessed),
    )(x, w1b, b1r, w2b, b2r, w3b, b3r)


def init_params(key):
    """Deterministic init mimicking nn.Linear's default (uniform +-1/sqrt(fan_in))."""
    def linear(k, fan_in, fan_out):
        kw, kb = jax.random.split(k)
        bound = 1.0 / jnp.sqrt(fan_in)
        w = jax.random.uniform(kw, (fan_out, fan_in), jnp.float32, -bound, bound)
        b = jax.random.uniform(kb, (fan_out,), jnp.float32, -bound, bound)
        return w, b

    k1, k2, k3 = jax.random.split(key, 3)
    w1, b1 = linear(k1, 28 * 28, 128)
    w2, b2 = linear(k2, 128, 64)
    w3, b3 = linear(k3, 64, 10)
    return (w1, b1, w2, b2, w3, b3)


def _reference_forward(x_nchw, params, *, bf16):
    """Pure-JAX reference. bf16=True mirrors the kernel's mixed precision."""
    w1, b1, w2, b2, w3, b3 = params
    cast = (lambda a: a.astype(jnp.bfloat16)) if bf16 else (lambda a: a.astype(jnp.float32))
    x = x_nchw.reshape(x_nchw.shape[0], 28 * 28)
    h = jnp.maximum(lax.dot_general(cast(x), cast(w1), _DN,
                                    preferred_element_type=jnp.float32) + b1, 0.0)
    h = jnp.maximum(lax.dot_general(cast(h), cast(w2), _DN,
                                    preferred_element_type=jnp.float32) + b2, 0.0)
    return lax.dot_general(cast(h), cast(w3), _DN,
                           preferred_element_type=jnp.float32) + b3


if __name__ == "__main__":
    key = jax.random.PRNGKey(0)
    kx, kp = jax.random.split(key)

    B = 8
    x = jax.random.normal(kx, (B, 1, 28, 28), jnp.float32)  # NCHW, like MNIST
    params = init_params(kp)

    out = simple_nn_forward(x, params)
    out = jax.block_until_ready(out)
    assert out.shape == (B, 10)

    # Tight check against a reference with identical bf16/f32-accum precision.
    ref_bf16 = _reference_forward(x, params, bf16=True)
    assert jnp.allclose(out, ref_bf16, atol=5e-3, rtol=5e-3), \
        float(jnp.max(jnp.abs(out - ref_bf16)))

    # Loose sanity check against full-f32 PyTorch semantics.
    ref_f32 = _reference_forward(x, params, bf16=False)
    assert jnp.allclose(out, ref_f32, atol=0.15, rtol=0.1)

    print("KERNEL_OK")
</pallas_src>

<mosaic_0001>
module attributes {stable_mosaic.version = 11 : i64} {
  func.func @_mlp_kernel(%arg0: i32, %arg1: memref<8x784xbf16, #tpu.memory_space<vmem>>, %arg2: memref<128x784xbf16, #tpu.memory_space<vmem>>, %arg3: memref<1x128xf32, #tpu.memory_space<vmem>>, %arg4: memref<64x128xbf16, #tpu.memory_space<vmem>>, %arg5: memref<1x64xf32, #tpu.memory_space<vmem>>, %arg6: memref<10x64xbf16, #tpu.memory_space<vmem>>, %arg7: memref<1x10xf32, #tpu.memory_space<vmem>>, %arg8: memref<8x10xf32, #tpu.memory_space<vmem>>) attributes {dimension_semantics = [#tpu.dimension_semantics<parallel>], iteration_bounds = array<i64: 1>, scalar_prefetch = 0 : i64, scratch_operands = 0 : i64, tpu.core_type = #tpu.core_type<tc>, window_params = [{transform_indices = @transform_0, window_bounds = array<i64: 8, 784>}, {pipeline_mode = #tpu.pipeline_mode<synchronous>, transform_indices = @transform_1, window_bounds = array<i64: 128, 784>}, {pipeline_mode = #tpu.pipeline_mode<synchronous>, transform_indices = @transform_2, window_bounds = array<i64: 1, 128>}, {pipeline_mode = #tpu.pipeline_mode<synchronous>, transform_indices = @transform_3, window_bounds = array<i64: 64, 128>}, {pipeline_mode = #tpu.pipeline_mode<synchronous>, transform_indices = @transform_4, window_bounds = array<i64: 1, 64>}, {pipeline_mode = #tpu.pipeline_mode<synchronous>, transform_indices = @transform_5, window_bounds = array<i64: 10, 64>}, {pipeline_mode = #tpu.pipeline_mode<synchronous>, transform_indices = @transform_6, window_bounds = array<i64: 1, 10>}, {transform_indices = @transform_7, window_bounds = array<i64: 8, 10>}]} {
    %c0 = arith.constant 0 : index
    %c0_0 = arith.constant 0 : index
    %0 = vector.load %arg1[%c0, %c0_0] : memref<8x784xbf16, #tpu.memory_space<vmem>>, vector<8x784xbf16>
    %c0_1 = arith.constant 0 : index
    %c0_2 = arith.constant 0 : index
    %1 = vector.load %arg2[%c0_1, %c0_2] : memref<128x784xbf16, #tpu.memory_space<vmem>>, vector<128x784xbf16>
    %cst = arith.constant dense<0.000000e+00> : vector<8x128xf32>
    %2 = tpu.matmul %0, %1, %cst {dimension_numbers = #tpu.dot_dimension_numbers<[1], [1], [0], [0], [0, 0, 1, 0], [], []>} : vector<8x784xbf16>, vector<128x784xbf16>, vector<8x128xf32> -> vector<8x128xf32>
    %c0_3 = arith.constant 0 : index
    %c0_4 = arith.constant 0 : index
    %3 = vector.load %arg3[%c0_3, %c0_4] : memref<1x128xf32, #tpu.memory_space<vmem>>, vector<1x128xf32>
    %4 = vector.broadcast %3 : vector<1x128xf32> to vector<8x128xf32>
    %5 = arith.addf %2, %4 : vector<8x128xf32>
    %cst_5 = arith.constant 0.000000e+00 : f32
    %6 = vector.broadcast %cst_5 : f32 to vector<8x128xf32>
    %7 = arith.maximumf %5, %6 : vector<8x128xf32>
    %8 = arith.truncf %7 : vector<8x128xf32> to vector<8x128xbf16>
    %c0_6 = arith.constant 0 : index
    %c0_7 = arith.constant 0 : index
    %9 = vector.load %arg4[%c0_6, %c0_7] : memref<64x128xbf16, #tpu.memory_space<vmem>>, vector<64x128xbf16>
    %cst_8 = arith.constant dense<0.000000e+00> : vector<8x64xf32>
    %10 = tpu.matmul %8, %9, %cst_8 {dimension_numbers = #tpu.dot_dimension_numbers<[1], [1], [0], [0], [0, 0, 1, 0], [], []>} : vector<8x128xbf16>, vector<64x128xbf16>, vector<8x64xf32> -> vector<8x64xf32>
    %c0_9 = arith.constant 0 : index
    %c0_10 = arith.constant 0 : index
    %11 = vector.load %arg5[%c0_9, %c0_10] : memref<1x64xf32, #tpu.memory_space<vmem>>, vector<1x64xf32>
    %12 = vector.broadcast %11 : vector<1x64xf32> to vector<8x64xf32>
    %13 = arith.addf %10, %12 : vector<8x64xf32>
    %cst_11 = arith.constant 0.000000e+00 : f32
    %14 = vector.broadcast %cst_11 : f32 to vector<8x64xf32>
    %15 = arith.maximumf %13, %14 : vector<8x64xf32>
    %16 = arith.truncf %15 : vector<8x64xf32> to vector<8x64xbf16>
    %c0_12 = arith.constant 0 : index
    %c0_13 = arith.constant 0 : index
    %17 = vector.load %arg6[%c0_12, %c0_13] : memref<10x64xbf16, #tpu.memory_space<vmem>>, vector<10x64xbf16>
    %cst_14 = arith.constant dense<0.000000e+00> : vector<8x10xf32>
    %18 = tpu.matmul %16, %17, %cst_14 {dimension_numbers = #tpu.dot_dimension_numbers<[1], [1], [0], [0], [0, 0, 1, 0], [], []>} : vector<8x64xbf16>, vector<10x64xbf16>, vector<8x10xf32> -> vector<8x10xf32>
    %c0_15 = arith.constant 0 : index
    %c0_16 = arith.constant 0 : index
    %19 = vector.load %arg7[%c0_15, %c0_16] : memref<1x10xf32, #tpu.memory_space<vmem>>, vector<1x10xf32>
    %20 = vector.broadcast %19 : vector<1x10xf32> to vector<8x10xf32>
    %21 = arith.addf %18, %20 : vector<8x10xf32>
    %c0_17 = arith.constant 0 : index
    %c0_18 = arith.constant 0 : index
    %22 = vector.load %arg8[%c0_17, %c0_18] : memref<8x10xf32, #tpu.memory_space<vmem>>, vector<8x10xf32>
    tpu.vector_store %arg8[%c0_17, %c0_18], %21 {strides = array<i32>} : memref<8x10xf32, #tpu.memory_space<vmem>>, vector<8x10xf32>,
    return
  }
  func.func @transform_0(%arg0: i32) -> (i32, i32) {
    %c0_i32 = arith.constant 0 : i32
    %c0_i32_0 = arith.constant 0 : i32
    return %arg0, %c0_i32 : i32, i32
  }
  func.func @transform_1(%arg0: i32) -> (i32, i32) {
    %c0_i32 = arith.constant 0 : i32
    %c0_i32_0 = arith.constant 0 : i32
    %c0_i32_1 = arith.constant 0 : i32
    return %c0_i32, %c0_i32_0 : i32, i32
  }
  func.func @transform_2(%arg0: i32) -> (i32, i32) {
    %c0_i32 = arith.constant 0 : i32
    %c0_i32_0 = arith.constant 0 : i32
    %c0_i32_1 = arith.constant 0 : i32
    return %c0_i32, %c0_i32_0 : i32, i32
  }
  func.func @transform_3(%arg0: i32) -> (i32, i32) {
    %c0_i32 = arith.constant 0 : i32
    %c0_i32_0 = arith.constant 0 : i32
    %c0_i32_1 = arith.constant 0 : i32
    return %c0_i32, %c0_i32_0 : i32, i32
  }
  func.func @transform_4(%arg0: i32) -> (i32, i32) {
    %c0_i32 = arith.constant 0 : i32
    %c0_i32_0 = arith.constant 0 : i32
    %c0_i32_1 = arith.constant 0 : i32
    return %c0_i32, %c0_i32_0 : i32, i32
  }
  func.func @transform_5(%arg0: i32) -> (i32, i32) {
    %c0_i32 = arith.constant 0 : i32
    %c0_i32_0 = arith.constant 0 : i32
    %c0_i32_1 = arith.constant 0 : i32
    return %c0_i32, %c0_i32_0 : i32, i32
  }
  func.func @transform_6(%arg0: i32) -> (i32, i32) {
    %c0_i32 = arith.constant 0 : i32
    %c0_i32_0 = arith.constant 0 : i32
    %c0_i32_1 = arith.constant 0 : i32
    return %c0_i32, %c0_i32_0 : i32, i32
  }
  func.func @transform_7(%arg0: i32) -> (i32, i32) {
    %c0_i32 = arith.constant 0 : i32
    %c0_i32_0 = arith.constant 0 : i32
    return %arg0, %c0_i32 : i32, i32
  }
}

</mosaic_0001>

<llo_original>
// kernel: tpu_custom_call.1
$region0: #{tpu_custom_call.1}
  #allocation0 [shape = 'u32[]', space=smem, size = 0x4, offset = 0x4, fixed_abs, tag = 'smem constant byte address 0x4 - core index']
  #allocation1 [shape = 'u32[144,128]{1,0:T(1,128)}', space=vmem, size = 0x12000, scoped, tag = 'internal scratch']
  %s0 = inlined_call_operand.vmem [shape: bf16[8,784], index: 0, kind: input, shape index: {}]
  %s1 = inlined_call_operand.vmem [shape: bf16[128,784], index: 1, kind: input, shape index: {}]
  %s2 = inlined_call_operand.vmem [shape: f32[1,128], index: 2, kind: input, shape index: {}]
  %s3 = inlined_call_operand.vmem [shape: bf16[64,128], index: 3, kind: input, shape index: {}]
  %s4 = inlined_call_operand.vmem [shape: f32[1,64], index: 4, kind: input, shape index: {}]
  %s5 = inlined_call_operand.vmem [shape: bf16[10,64], index: 5, kind: input, shape index: {}]
  %s6 = inlined_call_operand.vmem [shape: f32[1,10], index: 6, kind: input, shape index: {}]
  %s7 = inlined_call_operand.hbm [shape: f32[8,10], index: 7, kind: output, shape index: {}]
  %s8 = sld [smem:[#allocation0]]
  $region38: #{tpu_custom_call.1} parent=0
    _
  %s10 = ssub.s32 1, %s8
  %s11 = scalar_select 0, %s10, %s8
  $region1: #{tpu_custom_call.1} parent=0
    #allocation2 [shape = 'u8[4096]{0}', space=vmem, size = 0x1000, scoped, tag = 'output window, operand 0, single buffered']
    #allocation3 [shape = 's32[1]{0}', space=sflag, size = 0x4, scoped, tag = 'scoped memory for tpu_custom_call.1']
    %12 = vsyncpa [#allocation3], 0
    // Predicated region
    $region2: #{tpu_custom_call.1} parent=1 // pred_check
      _
    $region3: #{tpu_custom_call.1} parent=1 // pred_check_branch
      %14 = sbr.rel (0) target = $region5
    $region4: #{tpu_custom_call.1} parent=1 // pred_region
      _
    $region5: #{tpu_custom_call.1} parent=1 // pred_fallthru
      _
    // Predicated region
    $region6: #{tpu_custom_call.1} parent=1 // pred_check
      _
    $region7: #{tpu_custom_call.1} parent=1 // pred_check_branch
      %16 = sbr.rel (0) target = $region9
    $region8: #{tpu_custom_call.1} parent=1 // pred_region
      _
    $region9: #{tpu_custom_call.1} parent=1 // pred_fallthru
      _
    // Predicated region
    $region10: #{tpu_custom_call.1} parent=1 // pred_check
      _
    $region11: #{tpu_custom_call.1} parent=1 // pred_check_branch
      %18 = sbr.rel (0) target = $region13
    $region12: #{tpu_custom_call.1} parent=1 // pred_region
      _
    $region13: #{tpu_custom_call.1} parent=1 // pred_fallthru
      _
    // Predicated region
    $region14: #{tpu_custom_call.1} parent=1 // pred_check
      _
    $region15: #{tpu_custom_call.1} parent=1 // pred_check_branch
      %20 = sbr.rel (0) target = $region17
    $region16: #{tpu_custom_call.1} parent=1 // pred_region
      _
    $region17: #{tpu_custom_call.1} parent=1 // pred_fallthru
      _
    // Predicated region
    $region18: #{tpu_custom_call.1} parent=1 // pred_check
      _
    $region19: #{tpu_custom_call.1} parent=1 // pred_check_branch
      %22 = sbr.rel (0) target = $region21
    $region20: #{tpu_custom_call.1} parent=1 // pred_region
      _
    $region21: #{tpu_custom_call.1} parent=1 // pred_fallthru
      _
    // Predicated region
    $region22: #{tpu_custom_call.1} parent=1 // pred_check
      _
    $region23: #{tpu_custom_call.1} parent=1 // pred_check_branch
      %24 = sbr.rel (0) target = $region25
    $region24: #{tpu_custom_call.1} parent=1 // pred_region
      _
    $region25: #{tpu_custom_call.1} parent=1 // pred_fallthru
      _
    // Predicated region
    $region26: #{tpu_custom_call.1} parent=1 // pred_check
      _
    $region27: #{tpu_custom_call.1} parent=1 // pred_check_branch
      %26 = sbr.rel (0) target = $region29
    $region28: #{tpu_custom_call.1} parent=1 // pred_region
      _
    $region29: #{tpu_custom_call.1} parent=1 // pred_fallthru
      _
    %v28 = vld [vmem:[%s0] sm:$0xff]
    %v29 = vld [vmem:[%s0 + $0x8] sm:$0xff]
    %v30 = vld [vmem:[%s0 + $0x10] sm:$0xff]
    %v31 = vld [vmem:[%s0 + $0x18] sm:$0xf]
    %v32 = vld [vmem:[%s1] sm:$0xff]
    %v33 = vld [vmem:[%s1 + $0x8] sm:$0xff]
    %v34 = vld [vmem:[%s1 + $0x10] sm:$0xff]
    %v35 = vld [vmem:[%s1 + $0x18] sm:$0xf]
    %v36 = vld [vmem:[%s1 + $0x1c] sm:$0xff]
    %v37 = vld [vmem:[%s1 + $0x24] sm:$0xff]
    %v38 = vld [vmem:[%s1 + $0x2c] sm:$0xff]
    %v39 = vld [vmem:[%s1 + $0x34] sm:$0xf]
    %v40 = vld [vmem:[%s1 + $0x38] sm:$0xff]
    %v41 = vld [vmem:[%s1 + $0x40] sm:$0xff]
    %v42 = vld [vmem:[%s1 + $0x48] sm:$0xff]
    %v43 = vld [vmem:[%s1 + $0x50] sm:$0xf]
    %v44 = vld [vmem:[%s1 + $0x54] sm:$0xff]
    %v45 = vld [vmem:[%s1 + $0x5c] sm:$0xff]
    %v46 = vld [vmem:[%s1 + $0x64] sm:$0xff]
    %v47 = vld [vmem:[%s1 + $0x6c] sm:$0xf]
    %v48 = vld [vmem:[%s1 + $0x70] sm:$0xff]
    %v49 = vld [vmem:[%s1 + $0x78] sm:$0xff]
    %v50 = vld [vmem:[%s1 + $0x80] sm:$0xff]
    %v51 = vld [vmem:[%s1 + $0x88] sm:$0xf]
    %v52 = vld [vmem:[%s1 + $0x8c] sm:$0xff]
    %v53 = vld [vmem:[%s1 + $0x94] sm:$0xff]
    %v54 = vld [vmem:[%s1 + $0x9c] sm:$0xff]
    %v55 = vld [vmem:[%s1 + $0xa4] sm:$0xf]
    %v56 = vld [vmem:[%s1 + $0xa8] sm:$0xff]
    %v57 = vld [vmem:[%s1 + $0xb0] sm:$0xff]
    %v58 = vld [vmem:[%s1 + $0xb8] sm:$0xff]
    %v59 = vld [vmem:[%s1 + $0xc0] sm:$0xf]
    %v60 = vld [vmem:[%s1 + $0xc4] sm:$0xff]
    %v61 = vld [vmem:[%s1 + $0xcc] sm:$0xff]
    %v62 = vld [vmem:[%s1 + $0xd4] sm:$0xff]
    %v63 = vld [vmem:[%s1 + $0xdc] sm:$0xf]
    %v64 = vld [vmem:[%s1 + $0xe0] sm:$0xff]
    %v65 = vld [vmem:[%s1 + $0xe8] sm:$0xff]
    %v66 = vld [vmem:[%s1 + $0xf0] sm:$0xff]
    %v67 = vld [vmem:[%s1 + $0xf8] sm:$0xf]
    %v68 = vld [vmem:[%s1 + $0xfc] sm:$0xff]
    %v69 = vld [vmem:[%s1 + $0x104] sm:$0xff]
    %v70 = vld [vmem:[%s1 + $0x10c] sm:$0xff]
    %v71 = vld [vmem:[%s1 + $0x114] sm:$0xf]
    %v72 = vld [vmem:[%s1 + $0x118] sm:$0xff]
    %v73 = vld [vmem:[%s1 + $0x120] sm:$0xff]
    %v74 = vld [vmem:[%s1 + $0x128] sm:$0xff]
    %v75 = vld [vmem:[%s1 + $0x130] sm:$0xf]
    %v76 = vld [vmem:[%s1 + $0x134] sm:$0xff]
    %v77 = vld [vmem:[%s1 + $0x13c] sm:$0xff]
    %v78 = vld [vmem:[%s1 + $0x144] sm:$0xff]
    %v79 = vld [vmem:[%s1 + $0x14c] sm:$0xf]
    %v80 = vld [vmem:[%s1 + $0x150] sm:$0xff]
    %v81 = vld [vmem:[%s1 + $0x158] sm:$0xff]
    %v82 = vld [vmem:[%s1 + $0x160] sm:$0xff]
    %v83 = vld [vmem:[%s1 + $0x168] sm:$0xf]
    %v84 = vld [vmem:[%s1 + $0x16c] sm:$0xff]
    %v85 = vld [vmem:[%s1 + $0x174] sm:$0xff]
    %v86 = vld [vmem:[%s1 + $0x17c] sm:$0xff]
    %v87 = vld [vmem:[%s1 + $0x184] sm:$0xf]
    %v88 = vld [vmem:[%s1 + $0x188] sm:$0xff]
    %v89 = vld [vmem:[%s1 + $0x190] sm:$0xff]
    %v90 = vld [vmem:[%s1 + $0x198] sm:$0xff]
    %v91 = vld [vmem:[%s1 + $0x1a0] sm:$0xf]
    %v92 = vld [vmem:[%s1 + $0x1a4] sm:$0xff]
    %v93 = vld [vmem:[%s1 + $0x1ac] sm:$0xff]
    %v94 = vld [vmem:[%s1 + $0x1b4] sm:$0xff]
    %v95 = vld [vmem:[%s1 + $0x1bc] sm:$0xf]
    %v96 = vld [vmem:[%s2] sm:$0x1]
    %v98 = vlaneseq
    %v99 = vshrl.u32 %v98, 7
    %v100 = vsub.s32 0, %v99
    %v101 = vrot.slane %v96, %v100
    %v107 = vunpack.c.l.b16 %v28
    %v108 = vunpack.c.h.b16 %v28
    %v109 = vunpack.c.l.b16 %v29
    %v110 = vunpack.c.h.b16 %v29
    %v111 = vunpack.c.l.b16 %v30
    %v112 = vunpack.c.h.b16 %v30
    %v113 = vunpack.c.l.b16 %v31
    %v114 = vpack.c.b16 %v107, %v107
    %v115 = vpack.c.b16 %v108, %v108
    %v116 = vpack.c.b16 %v109, %v109
    %v117 = vpack.c.b16 %v110, %v110
    %v118 = vpack.c.b16 %v111, %v111
    %v119 = vpack.c.b16 %v112, %v112
    %v120 = vpack.c.b16 %v113, %v113
    %v191 = vunpack.c.l.b16 %v32
    %v192 = vunpack.c.h.b16 %v32
    %v193 = vunpack.c.l.b16 %v33
    %v194 = vunpack.c.h.b16 %v33
    %v195 = vunpack.c.l.b16 %v34
    %v196 = vunpack.c.h.b16 %v34
    %v197 = vunpack.c.l.b16 %v35
    %v198 = vunpack.c.l.b16 %v36
    %v199 = vunpack.c.h.b16 %v36
    %v200 = vunpack.c.l.b16 %v37
    %v201 = vunpack.c.h.b16 %v37
    %v202 = vunpack.c.l.b16 %v38
    %v203 = vunpack.c.h.b16 %v38
    %v204 = vunpack.c.l.b16 %v39
    %v205 = vunpack.c.l.b16 %v40
    %v206 = vunpack.c.h.b16 %v40
    %v207 = vunpack.c.l.b16 %v41
    %v208 = vunpack.c.h.b16 %v41
    %v209 = vunpack.c.l.b16 %v42
    %v210 = vunpack.c.h.b16 %v42
    %v211 = vunpack.c.l.b16 %v43
    %v212 = vunpack.c.l.b16 %v44
    %v213 = vunpack.c.h.b16 %v44
    %v214 = vunpack.c.l.b16 %v45
    %v215 = vunpack.c.h.b16 %v45
    %v216 = vunpack.c.l.b16 %v46
    %v217 = vunpack.c.h.b16 %v46
    %v218 = vunpack.c.l.b16 %v47
    %v219 = vunpack.c.l.b16 %v48
    %v220 = vunpack.c.h.b16 %v48
    %v221 = vunpack.c.l.b16 %v49
    %v222 = vunpack.c.h.b16 %v49
    %v223 = vunpack.c.l.b16 %v50
    %v224 = vunpack.c.h.b16 %v50
    %v225 = vunpack.c.l.b16 %v51
    %v226 = vunpack.c.l.b16 %v52
    %v227 = vunpack.c.h.b16 %v52
    %v228 = vunpack.c.l.b16 %v53
    %v229 = vunpack.c.h.b16 %v53
    %v230 = vunpack.c.l.b16 %v54
    %v231 = vunpack.c.h.b16 %v54
    %v232 = vunpack.c.l.b16 %v55
    %v233 = vunpack.c.l.b16 %v56
    %v234 = vunpack.c.h.b16 %v56
    %v235 = vunpack.c.l.b16 %v57
    %v236 = vunpack.c.h.b16 %v57
    %v237 = vunpack.c.l.b16 %v58
    %v238 = vunpack.c.h.b16 %v58
    %v239 = vunpack.c.l.b16 %v59
    %v240 = vunpack.c.l.b16 %v60
    %v241 = vunpack.c.h.b16 %v60
    %v242 = vunpack.c.l.b16 %v61
    %v243 = vunpack.c.h.b16 %v61
    %v244 = vunpack.c.l.b16 %v62
    %v245 = vunpack.c.h.b16 %v62
    %v246 = vunpack.c.l.b16 %v63
    %v247 = vunpack.c.l.b16 %v64
    %v248 = vunpack.c.h.b16 %v64
    %v249 = vunpack.c.l.b16 %v65
    %v250 = vunpack.c.h.b16 %v65
    %v251 = vunpack.c.l.b16 %v66
    %v252 = vunpack.c.h.b16 %v66
    %v253 = vunpack.c.l.b16 %v67
    %v254 = vunpack.c.l.b16 %v68
    %v255 = vunpack.c.h.b16 %v68
    %v256 = vunpack.c.l.b16 %v69
    %v257 = vunpack.c.h.b16 %v69
    %v258 = vunpack.c.l.b16 %v70
    %v259 = vunpack.c.h.b16 %v70
    %v260 = vunpack.c.l.b16 %v71
    %v261 = vunpack.c.l.b16 %v72
    %v262 = vunpack.c.h.b16 %v72
    %v263 = vunpack.c.l.b16 %v73
    %v264 = vunpack.c.h.b16 %v73
    %v265 = vunpack.c.l.b16 %v74
    %v266 = vunpack.c.h.b16 %v74
    %v267 = vunpack.c.l.b16 %v75
    %v268 = vunpack.c.l.b16 %v76
    %v269 = vunpack.c.h.b16 %v76
    %v270 = vunpack.c.l.b16 %v77
    %v271 = vunpack.c.h.b16 %v77
    %v272 = vunpack.c.l.b16 %v78
    %v273 = vunpack.c.h.b16 %v78
    %v274 = vunpack.c.l.b16 %v79
    %v275 = vunpack.c.l.b16 %v80
    %v276 = vunpack.c.h.b16 %v80
    %v277 = vunpack.c.l.b16 %v81
    %v278 = vunpack.c.h.b16 %v81
    %v279 = vunpack.c.l.b16 %v82
    %v280 = vunpack.c.h.b16 %v82
    %v281 = vunpack.c.l.b16 %v83
    %v282 = vunpack.c.l.b16 %v84
    %v283 = vunpack.c.h.b16 %v84
    %v284 = vunpack.c.l.b16 %v85
    %v285 = vunpack.c.h.b16 %v85
    %v286 = vunpack.c.l.b16 %v86
    %v287 = vunpack.c.h.b16 %v86
    %v288 = vunpack.c.l.b16 %v87
    %v289 = vunpack.c.l.b16 %v88
    %v290 = vunpack.c.h.b16 %v88
    %v291 = vunpack.c.l.b16 %v89
    %v292 = vunpack.c.h.b16 %v89
    %v293 = vunpack.c.l.b16 %v90
    %v294 = vunpack.c.h.b16 %v90
    %v295 = vunpack.c.l.b16 %v91
    %v296 = vunpack.c.l.b16 %v92
    %v297 = vunpack.c.h.b16 %v92
    %v298 = vunpack.c.l.b16 %v93
    %v299 = vunpack.c.h.b16 %v93
    %v300 = vunpack.c.l.b16 %v94
    %v301 = vunpack.c.h.b16 %v94
    %v302 = vunpack.c.l.b16 %v95
    %v303 = vpack.c.b16 %v198, %v191
    %v304 = vpack.c.b16 %v199, %v192
    %v305 = vpack.c.b16 %v200, %v193
    %v306 = vpack.c.b16 %v201, %v194
    %v307 = vpack.c.b16 %v202, %v195
    %v308 = vpack.c.b16 %v203, %v196
    %v309 = vpack.c.b16 %v204, %v197
    %v310 = vpack.c.b16 %v212, %v205
    %v311 = vpack.c.b16 %v213, %v206
    %v312 = vpack.c.b16 %v214, %v207
    %v313 = vpack.c.b16 %v215, %v208
    %v314 = vpack.c.b16 %v216, %v209
    %v315 = vpack.c.b16 %v217, %v210
    %v316 = vpack.c.b16 %v218, %v211
    %v317 = vpack.c.b16 %v226, %v219
    %v318 = vpack.c.b16 %v227, %v220
    %v319 = vpack.c.b16 %v228, %v221
    %v320 = vpack.c.b16 %v229, %v222
    %v321 = vpack.c.b16 %v230, %v223
    %v322 = vpack.c.b16 %v231, %v224
    %v323 = vpack.c.b16 %v232, %v225
    %v324 = vpack.c.b16 %v240, %v233
    %v325 = vpack.c.b16 %v241, %v234
    %v326 = vpack.c.b16 %v242, %v235
    %v327 = vpack.c.b16 %v243, %v236
    %v328 = vpack.c.b16 %v244, %v237
    %v329 = vpack.c.b16 %v245, %v238
    %v330 = vpack.c.b16 %v246, %v239
    %v331 = vpack.c.b16 %v254, %v247
    %v332 = vpack.c.b16 %v255, %v248
    %v333 = vpack.c.b16 %v256, %v249
    %v334 = vpack.c.b16 %v257, %v250
    %v335 = vpack.c.b16 %v258, %v251
    %v336 = vpack.c.b16 %v259, %v252
    %v337 = vpack.c.b16 %v260, %v253
    %v338 = vpack.c.b16 %v268, %v261
    %v339 = vpack.c.b16 %v269, %v262
    %v340 = vpack.c.b16 %v270, %v263
    %v341 = vpack.c.b16 %v271, %v264
    %v342 = vpack.c.b16 %v272, %v265
    %v343 = vpack.c.b16 %v273, %v266
    %v344 = vpack.c.b16 %v274, %v267
    %v345 = vpack.c.b16 %v282, %v275
    %v346 = vpack.c.b16 %v283, %v276
    %v347 = vpack.c.b16 %v284, %v277
    %v348 = vpack.c.b16 %v285, %v278
    %v349 = vpack.c.b16 %v286, %v279
    %v350 = vpack.c.b16 %v287, %v280
    %v351 = vpack.c.b16 %v288, %v281
    %v352 = vpack.c.b16 %v296, %v289
    %v353 = vpack.c.b16 %v297, %v290
    %v354 = vpack.c.b16 %v298, %v291
    %v355 = vpack.c.b16 %v299, %v292
    %v356 = vpack.c.b16 %v300, %v293
    %v357 = vpack.c.b16 %v301, %v294
    %v358 = vpack.c.b16 %v302, %v295
    %vm407 = vcmask 130048
    %v409 = vsel %vm407, %v120, 0
    %v412 = vsel %vm407, %v309, 0
    %v415 = vsel %vm407, %v316, 0
    %v418 = vsel %vm407, %v323, 0
    %v421 = vsel %vm407, %v330, 0
    %v424 = vsel %vm407, %v337, 0
    %v427 = vsel %vm407, %v344, 0
    %v430 = vsel %vm407, %v351, 0
    %v433 = vsel %vm407, %v358, 0
    %435 = vmatprep.subr.bf16.mxu0 %v353
    %436 = vmatpush1.bf16.xpose.msra.mxu0 %v352
    %437 = vmatprep.subr.bf16.mxu0 %v346
    %438 = vmatpush1.bf16.xpose.msra.mxu0 %v345
    %439 = vmatprep.subr.bf16.mxu0 %v339
    %440 = vmatpush1.bf16.xpose.msra.mxu0 %v338
    %441 = vmatprep.subr.bf16.mxu0 %v332
    %442 = vmatpush1.bf16.xpose.msra.mxu0 %v331
    %443 = vmatprep.subr.bf16.mxu0 %v325
    %444 = vmatpush1.bf16.xpose.msra.mxu0 %v324
    %445 = vmatprep.subr.bf16.mxu0 %v318
    %446 = vmatpush1.bf16.xpose.msra.mxu0 %v317
    %447 = vmatprep.subr.bf16.mxu0 %v311
    %448 = vmatpush1.bf16.xpose.msra.mxu0 %v310
    %449 = vmatprep.subr.bf16.mxu0 %v304
    %450 = vmatpush1.bf16.xpose.msra.mxu0 %v303
    %451 = vmatprep.subr.bf16.mxu0 0
    %452 = vmatpush2.bf16.xpose.msra.mxu0 0
    %453 = vmatprep.subr.bf16.mxu0 0
    %454 = vmatpush2.bf16.xpose.msra.mxu0 0
    %455 = vmatprep.subr.bf16.mxu0 0
    %456 = vmatpush2.bf16.xpose.msra.mxu0 0
    %457 = vmatprep.subr.bf16.mxu0 0
    %458 = vmatpush2.bf16.xpose.msra.mxu0 0
    %459 = vmatprep.subr.bf16.mxu0 0
    %460 = vmatpush2.bf16.xpose.msra.mxu0 0
    %461 = vmatprep.subr.bf16.mxu0 0
    %462 = vmatpush2.bf16.xpose.msra.mxu0 0
    %463 = vmatprep.subr.bf16.mxu0 0
    %464 = vmatpush2.bf16.xpose.msra.mxu0 0
    %465 = vmatprep.subr.bf16.mxu0 0
    %466 = vmatpush2.bf16.xpose.msra.mxu0 0
    %467 = vmatprep.mubr.bf16.mxu0 %v115
    %468 = vmatmul.mubr.bf16.gmra.mxu0 %v114
    %v469 = vpop.f32.mrf.mxu0
    %v470 = vadd.f32 %v101, %v469
    %v471 = vpop.f32.mrf.mxu0
    %v472 = vpop.f32.mrf.mxu0
    %v473 = vpop.f32.mrf.mxu0
    %474 = vdwg.mxu0
    %475 = vmatprep.subr.bf16.mxu0 %v355
    %476 = vmatpush1.bf16.xpose.msra.mxu0 %v354
    %477 = vmatprep.subr.bf16.mxu0 %v348
    %478 = vmatpush1.bf16.xpose.msra.mxu0 %v347
    %479 = vmatprep.subr.bf16.mxu0 %v341
    %480 = vmatpush1.bf16.xpose.msra.mxu0 %v340
    %481 = vmatprep.subr.bf16.mxu0 %v334
    %482 = vmatpush1.bf16.xpose.msra.mxu0 %v333
    %483 = vmatprep.subr.bf16.mxu0 %v327
    %484 = vmatpush1.bf16.xpose.msra.mxu0 %v326
    %485 = vmatprep.subr.bf16.mxu0 %v320
    %486 = vmatpush1.bf16.xpose.msra.mxu0 %v319
    %487 = vmatprep.subr.bf16.mxu0 %v313
    %488 = vmatpush1.bf16.xpose.msra.mxu0 %v312
    %489 = vmatprep.subr.bf16.mxu0 %v306
    %490 = vmatpush1.bf16.xpose.msra.mxu0 %v305
    %491 = vmatprep.subr.bf16.mxu0 0
    %492 = vmatpush2.bf16.xpose.msra.mxu0 0
    %493 = vmatprep.subr.bf16.mxu0 0
    %494 = vmatpush2.bf16.xpose.msra.mxu0 0
    %495 = vmatprep.subr.bf16.mxu0 0
    %496 = vmatpush2.bf16.xpose.msra.mxu0 0
    %497 = vmatprep.subr.bf16.mxu0 0
    %498 = vmatpush2.bf16.xpose.msra.mxu0 0
    %499 = vmatprep.subr.bf16.mxu0 0
    %500 = vmatpush2.bf16.xpose.msra.mxu0 0
    %501 = vmatprep.subr.bf16.mxu0 0
    %502 = vmatpush2.bf16.xpose.msra.mxu0 0
    %503 = vmatprep.subr.bf16.mxu0 0
    %504 = vmatpush2.bf16.xpose.msra.mxu0 0
    %505 = vmatprep.subr.bf16.mxu0 0
    %506 = vmatpush2.bf16.xpose.msra.mxu0 0
    %507 = vmatprep.mubr.bf16.mxu0 %v117
    %508 = vmatmul.mubr.bf16.gmra.mxu0 %v116
    %v509 = vpop.f32.mrf.mxu0
    %v510 = vadd.f32 %v470, %v509
    %v511 = vpop.f32.mrf.mxu0
    %v512 = vpop.f32.mrf.mxu0
    %v513 = vpop.f32.mrf.mxu0
    %514 = vdwg.mxu0
    %515 = vmatprep.subr.bf16.mxu0 %v357
    %516 = vmatpush1.bf16.xpose.msra.mxu0 %v356
    %517 = vmatprep.subr.bf16.mxu0 %v350
    %518 = vmatpush1.bf16.xpose.msra.mxu0 %v349
    %519 = vmatprep.subr.bf16.mxu0 %v343
    %520 = vmatpush1.bf16.xpose.msra.mxu0 %v342
    %521 = vmatprep.subr.bf16.mxu0 %v336
    %522 = vmatpush1.bf16.xpose.msra.mxu0 %v335
    %523 = vmatprep.subr.bf16.mxu0 %v329
    %524 = vmatpush1.bf16.xpose.msra.mxu0 %v328
    %525 = vmatprep.subr.bf16.mxu0 %v322
    %526 = vmatpush1.bf16.xpose.msra.mxu0 %v321
    %527 = vmatprep.subr.bf16.mxu0 %v315
    %528 = vmatpush1.bf16.xpose.msra.mxu0 %v314
    %529 = vmatprep.subr.bf16.mxu0 %v308
    %530 = vmatpush1.bf16.xpose.msra.mxu0 %v307
    %531 = vmatprep.subr.bf16.mxu0 0
    %532 = vmatpush2.bf16.xpose.msra.mxu0 0
    %533 = vmatprep.subr.bf16.mxu0 0
    %534 = vmatpush2.bf16.xpose.msra.mxu0 0
    %535 = vmatprep.subr.bf16.mxu0 0
    %536 = vmatpush2.bf16.xpose.msra.mxu0 0
    %537 = vmatprep.subr.bf16.mxu0 0
    %538 = vmatpush2.bf16.xpose.msra.mxu0 0
    %539 = vmatprep.subr.bf16.mxu0 0
    %540 = vmatpush2.bf16.xpose.msra.mxu0 0
    %541 = vmatprep.subr.bf16.mxu0 0
    %542 = vmatpush2.bf16.xpose.msra.mxu0 0
    %543 = vmatprep.subr.bf16.mxu0 0
    %544 = vmatpush2.bf16.xpose.msra.mxu0 0
    %545 = vmatprep.subr.bf16.mxu0 0
    %546 = vmatpush2.bf16.xpose.msra.mxu0 0
    %547 = vmatprep.mubr.bf16.mxu0 %v119
    %548 = vmatmul.mubr.bf16.gmra.mxu0 %v118
    %v549 = vpop.f32.mrf.mxu0
    %v550 = vadd.f32 %v510, %v549
    %v551 = vpop.f32.mrf.mxu0
    %v552 = vpop.f32.mrf.mxu0
    %v553 = vpop.f32.mrf.mxu0
    %554 = vdwg.mxu0
    %555 = vmatprep.subr.bf16.mxu0 0
    %556 = vmatpush1.bf16.xpose.msra.mxu0 %v433
    %557 = vmatprep.subr.bf16.mxu0 0
    %558 = vmatpush1.bf16.xpose.msra.mxu0 %v430
    %559 = vmatprep.subr.bf16.mxu0 0
    %560 = vmatpush1.bf16.xpose.msra.mxu0 %v427
    %561 = vmatprep.subr.bf16.mxu0 0
    %562 = vmatpush1.bf16.xpose.msra.mxu0 %v424
    %563 = vmatprep.subr.bf16.mxu0 0
    %564 = vmatpush1.bf16.xpose.msra.mxu0 %v421
    %565 = vmatprep.subr.bf16.mxu0 0
    %566 = vmatpush1.bf16.xpose.msra.mxu0 %v418
    %567 = vmatprep.subr.bf16.mxu0 0
    %568 = vmatpush1.bf16.xpose.msra.mxu0 %v415
    %569 = vmatprep.subr.bf16.mxu0 0
    %570 = vmatpush1.bf16.xpose.msra.mxu0 %v412
    %571 = vmatprep.subr.bf16.mxu0 0
    %572 = vmatpush2.bf16.xpose.msra.mxu0 0
    %573 = vmatprep.subr.bf16.mxu0 0
    %574 = vmatpush2.bf16.xpose.msra.mxu0 0
    %575 = vmatprep.subr.bf16.mxu0 0
    %576 = vmatpush2.bf16.xpose.msra.mxu0 0
    %577 = vmatprep.subr.bf16.mxu0 0
    %578 = vmatpush2.bf16.xpose.msra.mxu0 0
    %579 = vmatprep.subr.bf16.mxu0 0
    %580 = vmatpush2.bf16.xpose.msra.mxu0 0
    %581 = vmatprep.subr.bf16.mxu0 0
    %582 = vmatpush2.bf16.xpose.msra.mxu0 0
    %583 = vmatprep.subr.bf16.mxu0 0
    %584 = vmatpush2.bf16.xpose.msra.mxu0 0
    %585 = vmatprep.subr.bf16.mxu0 0
    %586 = vmatpush2.bf16.xpose.msra.mxu0 0
    %587 = vmatprep.mubr.bf16.mxu0 0
    %588 = vmatmul.mubr.bf16.gmra.mxu0 %v409
    %v589 = vpop.f32.mrf.mxu0
    %v590 = vadd.f32 %v550, %v589
    %v591 = vpop.f32.mrf.mxu0
    %v592 = vpop.f32.mrf.mxu0
    %v593 = vpop.f32.mrf.mxu0
    %594 = vdwg.mxu0
    %v595 = vmax.f32 %v590, 0.0
    %v596 = vpack.c.bf16 %v595, %v595
    %v597 = vld [vmem:[%s3] sm:$0xf]
    %v598 = vld [vmem:[%s3 + $0x4] sm:$0xf]
    %v599 = vld [vmem:[%s3 + $0x8] sm:$0xf]
    %v600 = vld [vmem:[%s3 + $0xc] sm:$0xf]
    %v601 = vld [vmem:[%s3 + $0x10] sm:$0xf]
    %v602 = vld [vmem:[%s3 + $0x14] sm:$0xf]
    %v603 = vld [vmem:[%s3 + $0x18] sm:$0xf]
    %v604 = vld [vmem:[%s3 + $0x1c] sm:$0xf]
    %v605 = vld [vmem:[%s4] sm:$0x1]
    %v607 = vlaneseq
    %v608 = vshrl.u32 %v607, 7
    %v609 = vsub.s32 0, %v608
    %v610 = vrot.slane %v605, %v609
    %v620 = vunpack.c.l.b16 %v597
    %v621 = vunpack.c.l.b16 %v598
    %v622 = vunpack.c.l.b16 %v599
    %v623 = vunpack.c.l.b16 %v600
    %v624 = vunpack.c.l.b16 %v601
    %v625 = vunpack.c.l.b16 %v602
    %v626 = vunpack.c.l.b16 %v603
    %v627 = vunpack.c.l.b16 %v604
    %v628 = vpack.c.b16 %v621, %v620
    %v629 = vpack.c.b16 %v623, %v622
    %v630 = vpack.c.b16 %v625, %v624
    %v631 = vpack.c.b16 %v627, %v626
    %636 = vmatprep.subr.bf16.mxu0 0
    %637 = vmatpush1.bf16.xpose.msra.mxu0 0
    %638 = vmatprep.subr.bf16.mxu0 0
    %639 = vmatpush1.bf16.xpose.msra.mxu0 0
    %640 = vmatprep.subr.bf16.mxu0 0
    %641 = vmatpush1.bf16.xpose.msra.mxu0 0
    %642 = vmatprep.subr.bf16.mxu0 0
    %643 = vmatpush1.bf16.xpose.msra.mxu0 0
    %644 = vmatprep.subr.bf16.mxu0 0
    %645 = vmatpush1.bf16.xpose.msra.mxu0 %v631
    %646 = vmatprep.subr.bf16.mxu0 0
    %647 = vmatpush1.bf16.xpose.msra.mxu0 %v630
    %648 = vmatprep.subr.bf16.mxu0 0
    %649 = vmatpush1.bf16.xpose.msra.mxu0 %v629
    %650 = vmatprep.subr.bf16.mxu0 0
    %651 = vmatpush1.bf16.xpose.msra.mxu0 %v628
    %652 = vmatprep.subr.bf16.mxu0 0
    %653 = vmatpush2.bf16.xpose.msra.mxu0 0
    %654 = vmatprep.subr.bf16.mxu0 0
    %655 = vmatpush2.bf16.xpose.msra.mxu0 0
    %656 = vmatprep.subr.bf16.mxu0 0
    %657 = vmatpush2.bf16.xpose.msra.mxu0 0
    %658 = vmatprep.subr.bf16.mxu0 0
    %659 = vmatpush2.bf16.xpose.msra.mxu0 0
    %660 = vmatprep.subr.bf16.mxu0 0
    %661 = vmatpush2.bf16.xpose.msra.mxu0 0
    %662 = vmatprep.subr.bf16.mxu0 0
    %663 = vmatpush2.bf16.xpose.msra.mxu0 0
    %664 = vmatprep.subr.bf16.mxu0 0
    %665 = vmatpush2.bf16.xpose.msra.mxu0 0
    %666 = vmatprep.subr.bf16.mxu0 0
    %667 = vmatpush2.bf16.xpose.msra.mxu0 0
    %668 = vmatprep.mubr.bf16.mxu0 0
    %669 = vmatmul.mubr.bf16.gmra.mxu0 %v596
    %v670 = vpop.f32.mrf.mxu0
    %v671 = vadd.f32 %v610, %v670
    %v672 = vpop.f32.mrf.mxu0
    %v673 = vpop.f32.mrf.mxu0
    %v674 = vpop.f32.mrf.mxu0
    %675 = vdwg.mxu0
    %v676 = vmax.f32 %v671, 0.0
    %v677 = vpack.c.bf16 %v676, %v676
    %v678 = vld [vmem:[%s5] sm:$0xf]
    %v679 = vld [vmem:[%s5 + $0x4] sm:$0x1]
    %v680 = vld [vmem:[%s6] sm:$0x1]
    %v682 = vlaneseq
    %v683 = vshrl.u32 %v682, 7
    %v684 = vsub.s32 0, %v683
    %v685 = vrot.slane %v680, %v684
    %v689 = vunpack.c.l.b16 %v678
    %v690 = vunpack.c.l.b16 %v679
    %v691 = vpack.c.b16 %v690, %v689
    %vm692 = vcmask 523264
    %v694 = vsel %vm692, %v677, 0
    %v697 = vsel %vm692, %v691, 0
    %699 = vmatprep.subr.bf16.mxu0 0
    %700 = vmatpush1.bf16.xpose.msra.mxu0 0
    %701 = vmatprep.subr.bf16.mxu0 0
    %702 = vmatpush1.bf16.xpose.msra.mxu0 0
    %703 = vmatprep.subr.bf16.mxu0 0
    %704 = vmatpush1.bf16.xpose.msra.mxu0 0
    %705 = vmatprep.subr.bf16.mxu0 0
    %706 = vmatpush1.bf16.xpose.msra.mxu0 0
    %707 = vmatprep.subr.bf16.mxu0 0
    %708 = vmatpush1.bf16.xpose.msra.mxu0 0
    %709 = vmatprep.subr.bf16.mxu0 0
    %710 = vmatpush1.bf16.xpose.msra.mxu0 0
    %711 = vmatprep.subr.bf16.mxu0 0
    %712 = vmatpush1.bf16.xpose.msra.mxu0 0
    %713 = vmatprep.subr.bf16.mxu0 0
    %714 = vmatpush1.bf16.xpose.msra.mxu0 %v697
    %715 = vmatprep.subr.bf16.mxu0 0
    %716 = vmatpush2.bf16.xpose.msra.mxu0 0
    %717 = vmatprep.subr.bf16.mxu0 0
    %718 = vmatpush2.bf16.xpose.msra.mxu0 0
    %719 = vmatprep.subr.bf16.mxu0 0
    %720 = vmatpush2.bf16.xpose.msra.mxu0 0
    %721 = vmatprep.subr.bf16.mxu0 0
    %722 = vmatpush2.bf16.xpose.msra.mxu0 0
    %723 = vmatprep.subr.bf16.mxu0 0
    %724 = vmatpush2.bf16.xpose.msra.mxu0 0
    %725 = vmatprep.subr.bf16.mxu0 0
    %726 = vmatpush2.bf16.xpose.msra.mxu0 0
    %727 = vmatprep.subr.bf16.mxu0 0
    %728 = vmatpush2.bf16.xpose.msra.mxu0 0
    %729 = vmatprep.subr.bf16.mxu0 0
    %730 = vmatpush2.bf16.xpose.msra.mxu0 0
    %731 = vmatprep.mubr.bf16.mxu0 0
    %732 = vmatmul.mubr.bf16.gmra.mxu0 %v694
    %v733 = vpop.f32.mrf.mxu0
    %v734 = vadd.f32 %v685, %v733
    %v735 = vpop.f32.mrf.mxu0
    %v736 = vpop.f32.mrf.mxu0
    %v737 = vpop.f32.mrf.mxu0
    %738 = vdwg.mxu0
    %vm739 = vcmask 80896
    %740 = vst.msk [vmem:[#allocation2] sm:$0xff] %vm739, %v734
    // Predicated region
    $region30: #{tpu_custom_call.1} parent=1 // pred_check
      _
    $region31: #{tpu_custom_call.1} parent=1 // pred_check_branch
      %742 = sbr.rel (0) target = $region33
    $region32: #{tpu_custom_call.1} parent=1 // pred_region
      %s744 = ssub.s32 128, 128
      %745 = vsyncadd [#allocation3], %s744
      %s747 = sshll.u32 [#allocation2], 4
      %s748 = int_to_ptr.vmem [resolvable:$true] %s747
      %750 = dma.vmem_to_hbm [thread:$0]  %s748, 128, %s7, [#allocation3]
    $region33: #{tpu_custom_call.1} parent=1 // pred_fallthru
      _
    // Predicated region
    $region34: #{tpu_custom_call.1} parent=1 // pred_check
      _
    $region35: #{tpu_custom_call.1} parent=1 // pred_check_branch
      %752 = sbr.rel (0) target = $region37
    $region36: #{tpu_custom_call.1} parent=1 // pred_region
      %753 = dma.done [#allocation3], 128
    $region37: #{tpu_custom_call.1} parent=1 // pred_fallthru
      _
    %754 = vsyncpa [#allocation3], 1

</llo_original>
